<compile_context>
chip_gen: v6e
topology: v6e:2x2x1
jax: 0.10.0
libtpu: 0.0.40
codegen_flags: <defaults>
</compile_context>

<pallas_src>
import functools

import jax
import jax.numpy as jnp
from jax.experimental import pallas as pl
from jax.experimental.pallas import tpu as pltpu

_LANES = 128
_SUBLANES = 8
# 8192 rows * 128 lanes * 4 B = 4 MiB per f32 input block.
_TILE_ROWS_TARGET = 8192
_MIN_TILE_ROWS = 512


def _round_up(x: int, m: int) -> int:
    return ((x + m - 1) // m) * m


def _row_tiling(rows: int):
    """Pick (tile_r, num_tiles) with tile_r % 8 == 0, preferring no row pad."""
    r8 = _round_up(rows, _SUBLANES)
    if r8 <= _TILE_ROWS_TARGET:
        return r8, 1                       # single full-row tile per sample
    # Exact multiple-of-8 divisor near the target -> no padding needed.
    t = _TILE_ROWS_TARGET
    while t >= _MIN_TILE_ROWS:
        if rows % t == 0:
            return t, rows // t
        t -= _SUBLANES
    # Fallback: zero-pad (< tile_r rows per sample), corrected in the epilogue.
    num_tiles = pl.cdiv(rows, _TILE_ROWS_TARGET)
    tile_r = _round_up(pl.cdiv(rows, num_tiles), _SUBLANES)
    return tile_r, num_tiles


def _sample_packing(num: int, tile_r: int, num_tiles: int) -> int:
    """Largest divisor of `num` packed per grid step (small-D case) while
    keeping blocks <= the row target and >= 2 grid steps for pipelining."""
    cap = max(1, _TILE_ROWS_TARGET // tile_r)
    if num_tiles == 1 and num > 1:
        cap = min(cap, num // 2)           # keep >=2 steps (pipeline/megacore)
    cap = max(1, min(cap, num))
    for d in range(cap, 0, -1):
        if num % d == 0:
            return d
    return 1


def _dice_sums_kernel(logits_ref, targets_ref, inter_ref, s12_ref):
    """Accumulate per-sample partial dice sums across feature tiles.

    logits_ref / targets_ref : (tile_n, tile_r, 128) VMEM input tiles.
    inter_ref / s12_ref      : (tile_n, 8, 128) f32 lane-dense accumulators,
                               resident across the reduction grid axis (1).
    """
    k = pl.program_id(1)

    @pl.when(k == 0)
    def _init():
        inter_ref[...] = jnp.zeros_like(inter_ref)
        s12_ref[...] = jnp.zeros_like(s12_ref)

    x = logits_ref[...].astype(jnp.float32)     # (tile_n, tile_r, 128)
    t = targets_ref[...].astype(jnp.float32)
    p = jax.nn.sigmoid(x)                       # EUP; overlaps with VPU / DMA

    tile_n, tile_r, lanes = p.shape
    nfold = tile_r // _SUBLANES                 # tile_r is a multiple of 8

    def fold(v):
        # (tile_n, tile_r, 128) -> (tile_n, 8, 128) via pure element-wise vreg
        # adds (VPU only); the reshape follows the native (8, 128) tiling.
        return v.reshape(tile_n, nfold, _SUBLANES, lanes).sum(axis=1)

    inter_ref[...] += fold(p * t)
    s12_ref[...] += fold(p + t)


@functools.partial(jax.jit, static_argnames=("smooth",))
def soft_dice_loss(logits, targets, smooth: float = 1.0):
    """Pallas-backed equivalent of SoftDiceLoss.forward (PyTorch)."""
    num = logits.shape[0]
    m1 = logits.reshape(num, -1)
    m2 = targets.reshape(num, -1)
    if m2.dtype == jnp.bool_:
        m2 = m2.astype(jnp.float32)
    D = m1.shape[1]

    rows = pl.cdiv(D, _LANES)
    tile_r, num_tiles = _row_tiling(rows)
    rows_pad = tile_r * num_tiles
    d_pad = rows_pad * _LANES
    pad_elems = d_pad - D

    if pad_elems:
        # Only ragged shapes pay this copy. Padded logits are exactly zero, so
        # their sigmoid(0)=0.5 contribution is removed analytically below.
        m1 = jnp.pad(m1, ((0, 0), (0, pad_elems)))
        m2 = jnp.pad(m2, ((0, 0), (0, pad_elems)))

    m1 = m1.reshape(num, rows_pad, _LANES)
    m2 = m2.reshape(num, rows_pad, _LANES)

    tile_n = _sample_packing(num, tile_r, num_tiles)

    acc_shape = jax.ShapeDtypeStruct((num, _SUBLANES, _LANES), jnp.float32)
    in_spec = pl.BlockSpec((tile_n, tile_r, _LANES), lambda n, k: (n, k, 0))
    out_spec = pl.BlockSpec((tile_n, _SUBLANES, _LANES), lambda n, k: (n, 0, 0))

    inter, s12 = pl.pallas_call(
        _dice_sums_kernel,
        out_shape=(acc_shape, acc_shape),
        grid_spec=pltpu.PrefetchScalarGridSpec(
            num_scalar_prefetch=0,
            grid=(num // tile_n, num_tiles),
            in_specs=[in_spec, in_spec],
            out_specs=[out_spec, out_spec],
        ),
        compiler_params=pltpu.CompilerParams(
            # Sample axis shards across TensorCores (v7x megacore); the
            # feature-tile axis is the serial reduction.
            dimension_semantics=("parallel", "arbitrary"),
            # <= ~17 MiB double-buffered working set (f32/f32 @ 8192 rows);
            # legal on v5e (128 MiB phys) and safely under v7x's 64 MiB.
            vmem_limit_bytes=28 * 1024 * 1024,
        ),
    )(m1, m2)

    # Tiny (8,128) accumulator reductions + scalar combine stay in plain JAX.
    inter = inter.sum(axis=(1, 2))
    s12 = s12.sum(axis=(1, 2))
    if pad_elems:
        # Each zero-padded logit contributes exactly sigmoid(0)=0.5 to sum(p)
        # and nothing to inter or sum(t).
        s12 = s12 - 0.5 * pad_elems

    score = 2.0 * (inter + smooth) / (s12 + smooth)
    return 1.0 - jnp.sum(score) / num


def _reference(logits, targets, smooth=1.0):
    num = logits.shape[0]
    probs = jax.nn.sigmoid(logits.astype(jnp.float32))
    m1 = probs.reshape(num, -1)
    m2 = targets.astype(jnp.float32).reshape(num, -1)
    inter = (m1 * m2).sum(axis=1)
    score = 2.0 * (inter + smooth) / (m1.sum(axis=1) + m2.sum(axis=1) + smooth)
    return 1.0 - score.sum() / num


if __name__ == "__main__":
    key = jax.random.PRNGKey(0)
    k1, k2, k3, k4 = jax.random.split(key, 4)

    # Case 1: NCHW shape like the PyTorch module's inputs (D divisible by 128,
    # no padding path, no pad copy).
    N, C, H, W = 2, 4, 16, 16
    logits = jax.random.normal(k1, (N, C, H, W), dtype=jnp.float32)
    targets = (jax.random.uniform(k2, (N, C, H, W)) > 0.5).astype(jnp.float32)

    loss = soft_dice_loss(logits, targets, smooth=1.0)
    jax.block_until_ready(loss)
    ref = _reference(logits, targets, smooth=1.0)
    assert jnp.allclose(loss, ref, atol=1e-4, rtol=1e-4), (loss, ref)

    # Case 2: ragged D (C*H*W not a multiple of 128) -> padded path with the
    # analytic 0.5*pad correction in the epilogue.
    N2, C2, H2, W2 = 2, 3, 7, 9
    logits2 = jax.random.normal(k3, (N2, C2, H2, W2), dtype=jnp.float32)
    targets2 = (jax.random.uniform(k4, (N2, C2, H2, W2)) > 0.5).astype(jnp.float32)

    loss2 = soft_dice_loss(logits2, targets2, smooth=1.0)
    jax.block_until_ready(loss2)
    ref2 = _reference(logits2, targets2, smooth=1.0)
    assert jnp.allclose(loss2, ref2, atol=1e-4, rtol=1e-4), (loss2, ref2)

    print("KERNEL_OK")
</pallas_src>

<mosaic_0001>
module attributes {stable_mosaic.version = 11 : i64} {
  func.func @_dice_sums_kernel(%arg0: i32, %arg1: i32, %arg2: memref<1x8x128xf32, #tpu.memory_space<vmem>>, %arg3: memref<1x8x128xf32, #tpu.memory_space<vmem>>, %arg4: memref<1x8x128xf32, #tpu.memory_space<vmem>>, %arg5: memref<1x8x128xf32, #tpu.memory_space<vmem>>) attributes {dimension_semantics = [#tpu.dimension_semantics<parallel>, #tpu.dimension_semantics<arbitrary>], iteration_bounds = array<i64: 2, 1>, scalar_prefetch = 0 : i64, scratch_operands = 0 : i64, tpu.core_type = #tpu.core_type<tc>, window_params = [{transform_indices = @transform_0, window_bounds = array<i64: 1, 8, 128>}, {transform_indices = @transform_1, window_bounds = array<i64: 1, 8, 128>}, {transform_indices = @transform_2, window_bounds = array<i64: 1, 8, 128>}, {transform_indices = @transform_3, window_bounds = array<i64: 1, 8, 128>}]} {
    %c0_i32 = arith.constant 0 : i32
    %0 = arith.cmpi eq, %arg1, %c0_i32 : i32
    %1 = arith.extui %0 : i1 to i32
    %c0_i32_0 = arith.constant 0 : i32
    %2 = arith.cmpi ne, %1, %c0_i32_0 : i32
    scf.if %2 {
      %cst_20 = arith.constant 0.000000e+00 : f32
      %22 = vector.broadcast %cst_20 : f32 to vector<1x8x128xf32>
      %c0_21 = arith.constant 0 : index
      %c0_22 = arith.constant 0 : index
      %c0_23 = arith.constant 0 : index
      %23 = vector.load %arg4[%c0_21, %c0_22, %c0_23] : memref<1x8x128xf32, #tpu.memory_space<vmem>>, vector<1x8x128xf32>
      tpu.vector_store %arg4[%c0_21, %c0_22, %c0_23], %22 {strides = array<i32>} : memref<1x8x128xf32, #tpu.memory_space<vmem>>, vector<1x8x128xf32>,
      %cst_24 = arith.constant 0.000000e+00 : f32
      %24 = vector.broadcast %cst_24 : f32 to vector<1x8x128xf32>
      %c0_25 = arith.constant 0 : index
      %c0_26 = arith.constant 0 : index
      %c0_27 = arith.constant 0 : index
      %25 = vector.load %arg5[%c0_25, %c0_26, %c0_27] : memref<1x8x128xf32, #tpu.memory_space<vmem>>, vector<1x8x128xf32>
      tpu.vector_store %arg5[%c0_25, %c0_26, %c0_27], %24 {strides = array<i32>} : memref<1x8x128xf32, #tpu.memory_space<vmem>>, vector<1x8x128xf32>,
    } else {
    }
    %c0 = arith.constant 0 : index
    %c0_1 = arith.constant 0 : index
    %c0_2 = arith.constant 0 : index
    %3 = vector.load %arg2[%c0, %c0_1, %c0_2] : memref<1x8x128xf32, #tpu.memory_space<vmem>>, vector<1x8x128xf32>
    %c0_3 = arith.constant 0 : index
    %c0_4 = arith.constant 0 : index
    %c0_5 = arith.constant 0 : index
    %4 = vector.load %arg3[%c0_3, %c0_4, %c0_5] : memref<1x8x128xf32, #tpu.memory_space<vmem>>, vector<1x8x128xf32>
    %5 = arith.negf %3 : vector<1x8x128xf32>
    %6 = math.exp %5 : vector<1x8x128xf32>
    %cst = arith.constant 1.000000e+00 : f32
    %7 = vector.broadcast %cst : f32 to vector<1x8x128xf32>
    %8 = arith.addf %7, %6 : vector<1x8x128xf32>
    %9 = arith.divf %7, %8 : vector<1x8x128xf32>
    %c0_6 = arith.constant 0 : index
    %c0_7 = arith.constant 0 : index
    %c0_8 = arith.constant 0 : index
    %10 = vector.load %arg4[%c0_6, %c0_7, %c0_8] : memref<1x8x128xf32, #tpu.memory_space<vmem>>, vector<1x8x128xf32>
    %11 = arith.mulf %9, %4 : vector<1x8x128xf32>
    %12 = vector.shape_cast %11 : vector<1x8x128xf32> to vector<1x1x8x128xf32>
    %cst_9 = arith.constant dense<0.000000e+00> : vector<1x8x128xf32>
    %13 = vector.multi_reduction <add>, %12, %cst_9 [1] : vector<1x1x8x128xf32> to vector<1x8x128xf32>
    %14 = arith.addf %10, %13 : vector<1x8x128xf32>
    %c0_10 = arith.constant 0 : index
    %c0_11 = arith.constant 0 : index
    %c0_12 = arith.constant 0 : index
    %15 = vector.load %arg4[%c0_10, %c0_11, %c0_12] : memref<1x8x128xf32, #tpu.memory_space<vmem>>, vector<1x8x128xf32>
    tpu.vector_store %arg4[%c0_10, %c0_11, %c0_12], %14 {strides = array<i32>} : memref<1x8x128xf32, #tpu.memory_space<vmem>>, vector<1x8x128xf32>,
    %c0_13 = arith.constant 0 : index
    %c0_14 = arith.constant 0 : index
    %c0_15 = arith.constant 0 : index
    %16 = vector.load %arg5[%c0_13, %c0_14, %c0_15] : memref<1x8x128xf32, #tpu.memory_space<vmem>>, vector<1x8x128xf32>
    %17 = arith.addf %9, %4 : vector<1x8x128xf32>
    %18 = vector.shape_cast %17 : vector<1x8x128xf32> to vector<1x1x8x128xf32>
    %cst_16 = arith.constant dense<0.000000e+00> : vector<1x8x128xf32>
    %19 = vector.multi_reduction <add>, %18, %cst_16 [1] : vector<1x1x8x128xf32> to vector<1x8x128xf32>
    %20 = arith.addf %16, %19 : vector<1x8x128xf32>
    %c0_17 = arith.constant 0 : index
    %c0_18 = arith.constant 0 : index
    %c0_19 = arith.constant 0 : index
    %21 = vector.load %arg5[%c0_17, %c0_18, %c0_19] : memref<1x8x128xf32, #tpu.memory_space<vmem>>, vector<1x8x128xf32>
    tpu.vector_store %arg5[%c0_17, %c0_18, %c0_19], %20 {strides = array<i32>} : memref<1x8x128xf32, #tpu.memory_space<vmem>>, vector<1x8x128xf32>,
    return
  }
  func.func @transform_0(%arg0: i32, %arg1: i32) -> (i32, i32, i32) {
    %c0_i32 = arith.constant 0 : i32
    %c0_i32_0 = arith.constant 0 : i32
    return %arg0, %arg1, %c0_i32 : i32, i32, i32
  }
  func.func @transform_1(%arg0: i32, %arg1: i32) -> (i32, i32, i32) {
    %c0_i32 = arith.constant 0 : i32
    %c0_i32_0 = arith.constant 0 : i32
    return %arg0, %arg1, %c0_i32 : i32, i32, i32
  }
  func.func @transform_2(%arg0: i32, %arg1: i32) -> (i32, i32, i32) {
    %c0_i32 = arith.constant 0 : i32
    %c0_i32_0 = arith.constant 0 : i32
    %c0_i32_1 = arith.constant 0 : i32
    return %arg0, %c0_i32, %c0_i32_0 : i32, i32, i32
  }
  func.func @transform_3(%arg0: i32, %arg1: i32) -> (i32, i32, i32) {
    %c0_i32 = arith.constant 0 : i32
    %c0_i32_0 = arith.constant 0 : i32
    %c0_i32_1 = arith.constant 0 : i32
    return %arg0, %c0_i32, %c0_i32_0 : i32, i32, i32
  }
}

</mosaic_0001>

<llo_original>
// kernel: soft_dice_loss.1
$region0: #{soft_dice_loss.1}
  #allocation0 [shape = 'u32[]', space=smem, size = 0x4, offset = 0x4, fixed_abs, tag = 'smem constant byte address 0x4 - core index']
  #allocation1 [shape = 'u32[144,128]{1,0:T(1,128)}', space=vmem, size = 0x12000, scoped, tag = 'internal scratch']
  %s0 = inlined_call_operand.vmem [shape: f32[2,8,128], index: 0, kind: input, shape index: {}]
  %s1 = inlined_call_operand.vmem [shape: f32[2,8,128], index: 1, kind: input, shape index: {}]
  %s2 = inlined_call_operand.vmem [shape: f32[2,8,128], index: 2, kind: output, shape index: {0}]
  %s3 = inlined_call_operand.vmem [shape: f32[2,8,128], index: 3, kind: output, shape index: {1}]
  %4 = xla_tuple %s2, %s3
  %s5 = sld [smem:[#allocation0]]
  $region53: #{soft_dice_loss.1} parent=0
    _
  %s7 = ssub.s32 1, %s5
  %s8 = scalar_select 0, %s7, %s5
  loop: start=0, step=1, limit=4
  $region2: #{soft_dice_loss.1} parent=0 // loop_pre_header
    _
  $region3: #{soft_dice_loss.1} parent=0 // loop_header
    %s10 = sphi 0, %s14
    %p11 = scmp.ge.s32.totalorder %s10, 4
    %s17 = sphi 0, %s29
    %s18 = sphi 0, %s25
    %s19 = sphi 0, %s17
    %s20 = sphi 0, %s18
    %s21 = sphi 0, %s19
    %s22 = sphi 0, %s20
    %s34 = sphi 0, %s36
    %s37 = sphi 0, %s34
    %s38 = sphi 0, %s37
    %s54 = sphi 0, %s38
    %s62 = sphi 0, %s64
    %s65 = sphi 0, %s62
    %s66 = sphi 0, %s65
    %s82 = sphi 0, %s66
    %s88 = sphi 0, %s90
    %s91 = sphi 0, %s88
    %s92 = sphi 0, %s91
    %s108 = sphi 0, %s92
    %s114 = sphi 0, %s116
    %s117 = sphi 0, %s114
    %s118 = sphi 0, %s117
    %s134 = sphi 0, %s118
  $region4: #{soft_dice_loss.1} parent=0 // loop_header_branch
    %13 = sbr.rel (%p11) target = $region8
  $region5: #{soft_dice_loss.1} parent=0 // loop_body
    %s15 = ssub.s32 %s10, 1
    %s16 = ssub.s32 %s10, 2
    %s23 = sadd.s32 1, %s18
    %p24 = scmp.ge.s32.totalorder %s23, 1
    %s25 = scalar_select %p24, 0, %s23
    %s26 = sadd.s32 1, %s17
    %s27 = scalar_select %p24, %s26, %s17
    %p28 = scmp.ge.s32.totalorder %s27, 2
    %s29 = scalar_select %p28, 0, %s27
    %s30 = ssub.s32 %s17, %s29
    %s31 = ssub.s32 %s18, %s25
    %s32 = sor.u32 %s30, %s31
    %p33 = scmp.eq.s32.totalorder %s32, 0
    %s35 = sadd.s32 %s34, 1
    %s36 = scalar_select %p33, %s34, %s35
    %p39 = pneg %p33
    %p40 = scmp.eq.s32.totalorder %s10, 1
    %p41 = por %p39, %p40
    %p42 = scmp.ne.s32.totalorder %s34, %s37
    %p43 = scmp.eq.s32.totalorder %s10, 0
    %p44 = por %p42, %p43
    %p45 = scmp.ne.s32.totalorder %s34, %s37
    %p46 = scmp.eq.s32.totalorder %s15, 1
    %p47 = por %p45, %p46
    %p48 = scmp.ne.s32.totalorder %s37, %s38
    %p49 = scmp.eq.s32.totalorder %s15, 0
    %p50 = por %p48, %p49
    %p51 = scmp.ne.s32.totalorder %s37, %s38
    %p52 = scmp.eq.s32.totalorder %s16, 1
    %p53 = por %p51, %p52
    %p55 = scmp.ne.s32.totalorder %s38, %s54
    %p56 = scmp.eq.s32.totalorder %s16, 0
    %p57 = por %p55, %p56
    %s58 = ssub.s32 %s17, %s29
    %s59 = ssub.s32 %s18, %s25
    %s60 = sor.u32 %s58, %s59
    %p61 = scmp.eq.s32.totalorder %s60, 0
    %s63 = sadd.s32 %s62, 1
    %s64 = scalar_select %p61, %s62, %s63
    %p67 = pneg %p61
    %p68 = scmp.eq.s32.totalorder %s10, 1
    %p69 = por %p67, %p68
    %p70 = scmp.ne.s32.totalorder %s62, %s65
    %p71 = scmp.eq.s32.totalorder %s10, 0
    %p72 = por %p70, %p71
    %p73 = scmp.ne.s32.totalorder %s62, %s65
    %p74 = scmp.eq.s32.totalorder %s15, 1
    %p75 = por %p73, %p74
    %p76 = scmp.ne.s32.totalorder %s65, %s66
    %p77 = scmp.eq.s32.totalorder %s15, 0
    %p78 = por %p76, %p77
    %p79 = scmp.ne.s32.totalorder %s65, %s66
    %p80 = scmp.eq.s32.totalorder %s16, 1
    %p81 = por %p79, %p80
    %p83 = scmp.ne.s32.totalorder %s66, %s82
    %p84 = scmp.eq.s32.totalorder %s16, 0
    %p85 = por %p83, %p84
    %s86 = ssub.s32 %s17, %s29
    %p87 = scmp.eq.s32.totalorder %s86, 0
    %s89 = sadd.s32 %s88, 1
    %s90 = scalar_select %p87, %s88, %s89
    %p93 = pneg %p87
    %p94 = scmp.eq.s32.totalorder %s10, 1
    %p95 = por %p93, %p94
    %p96 = scmp.ne.s32.totalorder %s88, %s91
    %p97 = scmp.eq.s32.totalorder %s10, 0
    %p98 = por %p96, %p97
    %p99 = scmp.ne.s32.totalorder %s88, %s91
    %p100 = scmp.eq.s32.totalorder %s15, 1
    %p101 = por %p99, %p100
    %p102 = scmp.ne.s32.totalorder %s91, %s92
    %p103 = scmp.eq.s32.totalorder %s15, 0
    %p104 = por %p102, %p103
    %p105 = scmp.ne.s32.totalorder %s91, %s92
    %p106 = scmp.eq.s32.totalorder %s16, 1
    %p107 = por %p105, %p106
    %p109 = scmp.ne.s32.totalorder %s92, %s108
    %p110 = scmp.eq.s32.totalorder %s16, 0
    %p111 = por %p109, %p110
    %s112 = ssub.s32 %s17, %s29
    %p113 = scmp.eq.s32.totalorder %s112, 0
    %s115 = sadd.s32 %s114, 1
    %s116 = scalar_select %p113, %s114, %s115
    %p119 = pneg %p113
    %p120 = scmp.eq.s32.totalorder %s10, 1
    %p121 = por %p119, %p120
    %p122 = scmp.ne.s32.totalorder %s114, %s117
    %p123 = scmp.eq.s32.totalorder %s10, 0
    %p124 = por %p122, %p123
    %p125 = scmp.ne.s32.totalorder %s114, %s117
    %p126 = scmp.eq.s32.totalorder %s15, 1
    %p127 = por %p125, %p126
    %p128 = scmp.ne.s32.totalorder %s117, %s118
    %p129 = scmp.eq.s32.totalorder %s15, 0
    %p130 = por %p128, %p129
    %p131 = scmp.ne.s32.totalorder %s117, %s118
    %p132 = scmp.eq.s32.totalorder %s16, 1
    %p133 = por %p131, %p132
    %p135 = scmp.ne.s32.totalorder %s118, %s134
    %p136 = scmp.eq.s32.totalorder %s16, 0
    %p137 = por %p135, %p136
    %p138 = scmp.le.s32.totalorder 1, %s10
    %p139 = scmp.lt.s32.totalorder %s10, 3
    %p140 = pnand %p138, %p139
    %p141 = pneg %p140
    // Predicated region
    $region9: #{soft_dice_loss.1} parent=5 // pred_check
      _
    $region10: #{soft_dice_loss.1} parent=5 // pred_check_branch
      %143 = sbr.rel (%p140) target = $region12
    $region11: #{soft_dice_loss.1} parent=5 // pred_region
      %s144 = ssub.s32 %s10, 1
    $region12: #{soft_dice_loss.1} parent=5 // pred_fallthru
      _
    %p145 = scmp.lt.s32.totalorder %s10, 2
    // Predicated region
    $region13: #{soft_dice_loss.1} parent=5 // pred_check
      %p146 = pneg %p145
    $region14: #{soft_dice_loss.1} parent=5 // pred_check_branch
      %148 = sbr.rel (%p146) target = $region16
    $region15: #{soft_dice_loss.1} parent=5 // pred_region
      // Predicated region
      $region17: #{soft_dice_loss.1} parent=15 // pred_check
        %p149 = pneg %p44
      $region18: #{soft_dice_loss.1} parent=15 // pred_check_branch
        %151 = sbr.rel (%p149) target = $region20
      $region19: #{soft_dice_loss.1} parent=15 // pred_region
        %p152 = scmp.lt.s32.totalorder %s17, 1
        %s153 = scalar_select %p152, %s17, 1
        %p154 = scmp.lt.s32.totalorder %s18, 0
        %s155 = scalar_select %p154, %s18, 0
        %s156 = sadd.s32 %s155, %s153
        %s157 = smul.addr %s156, 8
        %s158 = scalar_lea.vmem %s0, %s157
      $region20: #{soft_dice_loss.1} parent=15 // pred_fallthru
        _
      // Predicated region
      $region21: #{soft_dice_loss.1} parent=15 // pred_check
        %p159 = pneg %p72
      $region22: #{soft_dice_loss.1} parent=15 // pred_check_branch
        %161 = sbr.rel (%p159) target = $region24
      $region23: #{soft_dice_loss.1} parent=15 // pred_region
        %p162 = scmp.lt.s32.totalorder %s17, 1
        %s163 = scalar_select %p162, %s17, 1
        %p164 = scmp.lt.s32.totalorder %s18, 0
        %s165 = scalar_select %p164, %s18, 0
        %s166 = sadd.s32 %s165, %s163
        %s167 = smul.addr %s166, 8
        %s168 = scalar_lea.vmem %s1, %s167
      $region24: #{soft_dice_loss.1} parent=15 // pred_fallthru
        _
    $region16: #{soft_dice_loss.1} parent=5 // pred_fallthru
      _
    %p169 = scmp.le.s32.totalorder 1, %s10
    %p170 = scmp.lt.s32.totalorder %s10, 3
    %p171 = pnand %p169, %p170
    %p172 = pneg %p171
    // Predicated region
    $region25: #{soft_dice_loss.1} parent=5 // pred_check
      _
    $region26: #{soft_dice_loss.1} parent=5 // pred_check_branch
      %174 = sbr.rel (%p171) target = $region28
    $region27: #{soft_dice_loss.1} parent=5 // pred_region
      %s175 = ssub.s32 %s10, 1
      %p176 = scmp.lt.s32.totalorder %s19, 1
      %s177 = scalar_select %p176, %s19, 1
      %p178 = scmp.lt.s32.totalorder %s20, 0
      %s179 = scalar_select %p178, %s20, 0
      %s180 = sadd.s32 %s179, %s177
      %s181 = smul.addr %s180, 8
      %s182 = scalar_lea.vmem %s0, %s181
      %p183 = pneg %p50
      %p184 = pneg %p47
      %p185 = scmp.lt.s32.totalorder %s19, 1
      %s186 = scalar_select %p185, %s19, 1
      %p187 = scmp.lt.s32.totalorder %s20, 0
      %s188 = scalar_select %p187, %s20, 0
      %s189 = sadd.s32 %s188, %s186
      %s190 = smul.addr %s189, 8
      %s191 = scalar_lea.vmem %s1, %s190
      %p192 = pneg %p78
      %p193 = pneg %p75
      %p194 = pneg %p104
      %p195 = pneg %p101
      %p196 = scmp.lt.s32.totalorder %s19, 1
      %s197 = scalar_select %p196, %s19, 1
      %s198 = smul.addr %s197, 8
      %s199 = scalar_lea.vmem %s2, %s198
      %p200 = pneg %p130
      %p201 = pneg %p127
      %p202 = scmp.lt.s32.totalorder %s19, 1
      %s203 = scalar_select %p202, %s19, 1
      %s204 = smul.addr %s203, 8
      %s205 = scalar_lea.vmem %s3, %s204
      %p206 = scmp.lt.s32.totalorder %s19, 1
      %s207 = scalar_select %p206, %s19, 1
      %p208 = scmp.lt.s32.totalorder %s20, 0
      %s209 = scalar_select %p208, %s20, 0
      %s210 = sadd.s32 %s209, %s207
      %s211 = smul.addr %s210, 8
      %s212 = scalar_lea.vmem %s0, %s211
      %p213 = scmp.lt.s32.totalorder %s19, 1
      %s214 = scalar_select %p213, %s19, 1
      %p215 = scmp.lt.s32.totalorder %s20, 0
      %s216 = scalar_select %p215, %s20, 0
      %s217 = sadd.s32 %s216, %s214
      %s218 = smul.addr %s217, 8
      %s219 = scalar_lea.vmem %s1, %s218
      %p220 = scmp.lt.s32.totalorder %s19, 1
      %s221 = scalar_select %p220, %s19, 1
      %s222 = smul.addr %s221, 8
      %s223 = scalar_lea.vmem %s2, %s222
      %p224 = scmp.lt.s32.totalorder %s19, 1
      %s225 = scalar_select %p224, %s19, 1
      %s226 = smul.addr %s225, 8
      %s227 = scalar_lea.vmem %s3, %s226
      %p228 = scmp.eq.s32.totalorder %s20, 0
      // Predicated region
      $region29: #{soft_dice_loss.1} parent=27 // pred_check
        %p229 = pneg %p228
      $region30: #{soft_dice_loss.1} parent=27 // pred_check_branch
        %231 = sbr.rel (%p229) target = $region32
      $region31: #{soft_dice_loss.1} parent=27 // pred_region
        %232 = vst [vmem:[%s223] sm:$0xff] 0.0
        %233 = vst [vmem:[%s227] sm:$0xff] 0.0
      $region32: #{soft_dice_loss.1} parent=27 // pred_fallthru
        _
      %v234 = vld [vmem:[%s212] sm:$0xff]
      %v235 = vld [vmem:[%s219] sm:$0xff]
      %v236 = vxor.u32 %v234, 2147483648
      %v237 = vmul.f32 %v236, 1.442695
      %v238 = vpow.pop %v237
      %v239 = vadd.f32 %v238, 1.0
      %v240 = vrcp.pop %v239
      %v241 = vmul.f32 1.0, %v240
      %v242 = vld [vmem:[%s223] sm:$0xff]
      %v243 = vmul.f32 %v241, %v235
      %v244 = vadd.f32 %v243, 0.0
      %v245 = vadd.f32 %v242, %v244
      %246 = vst [vmem:[%s223] sm:$0xff] %v245
      %v247 = vld [vmem:[%s227] sm:$0xff]
      %v248 = vadd.f32 %v241, %v235
      %v249 = vadd.f32 %v248, 0.0
      %v250 = vadd.f32 %v247, %v249
      %251 = vst [vmem:[%s227] sm:$0xff] %v250
      %p252 = scmp.lt.s32.totalorder %s19, 1
      %s253 = scalar_select %p252, %s19, 1
      %s254 = smul.addr %s253, 8
      %s255 = scalar_lea.vmem %s2, %s254
      %p256 = scmp.lt.s32.totalorder %s19, 1
      %s257 = scalar_select %p256, %s19, 1
      %s258 = smul.addr %s257, 8
      %s259 = scalar_lea.vmem %s3, %s258
      // Predicated region
      $region33: #{soft_dice_loss.1} parent=27 // pred_check
        %p260 = pneg %p101
      $region34: #{soft_dice_loss.1} parent=27 // pred_check_branch
        %262 = sbr.rel (%p260) target = $region36
      $region35: #{soft_dice_loss.1} parent=27 // pred_region
        _
      $region36: #{soft_dice_loss.1} parent=27 // pred_fallthru
        _
      // Predicated region
      $region37: #{soft_dice_loss.1} parent=27 // pred_check
        %p263 = pneg %p127
      $region38: #{soft_dice_loss.1} parent=27 // pred_check_branch
        %265 = sbr.rel (%p263) target = $region40
      $region39: #{soft_dice_loss.1} parent=27 // pred_region
        _
      $region40: #{soft_dice_loss.1} parent=27 // pred_fallthru
        _
    $region28: #{soft_dice_loss.1} parent=5 // pred_fallthru
      _
    %p266 = scmp.le.s32.totalorder 2, %s10
    // Predicated region
    $region41: #{soft_dice_loss.1} parent=5 // pred_check
      %p267 = pneg %p266
    $region42: #{soft_dice_loss.1} parent=5 // pred_check_branch
      %269 = sbr.rel (%p267) target = $region44
    $region43: #{soft_dice_loss.1} parent=5 // pred_region
      %s270 = ssub.s32 %s10, 2
      // Predicated region
      $region45: #{soft_dice_loss.1} parent=43 // pred_check
        %p271 = pneg %p107
      $region46: #{soft_dice_loss.1} parent=43 // pred_check_branch
        %273 = sbr.rel (%p271) target = $region48
      $region47: #{soft_dice_loss.1} parent=43 // pred_region
        %p274 = scmp.lt.s32.totalorder %s21, 1
        %s275 = scalar_select %p274, %s21, 1
        %s276 = smul.addr %s275, 8
        %s277 = scalar_lea.vmem %s2, %s276
      $region48: #{soft_dice_loss.1} parent=43 // pred_fallthru
        _
      // Predicated region
      $region49: #{soft_dice_loss.1} parent=43 // pred_check
        %p278 = pneg %p133
      $region50: #{soft_dice_loss.1} parent=43 // pred_check_branch
        %280 = sbr.rel (%p278) target = $region52
      $region51: #{soft_dice_loss.1} parent=43 // pred_region
        %p281 = scmp.lt.s32.totalorder %s21, 1
        %s282 = scalar_select %p281, %s21, 1
        %s283 = smul.addr %s282, 8
        %s284 = scalar_lea.vmem %s3, %s283
      $region52: #{soft_dice_loss.1} parent=43 // pred_fallthru
        _
    $region44: #{soft_dice_loss.1} parent=5 // pred_fallthru
      _
  $region6: #{soft_dice_loss.1} parent=0 // loop_footer
    %s14 = sadd.s32 1, %s10
  $region7: #{soft_dice_loss.1} parent=0 // loop_footer_branch
    %9 = sbr.rel target = $region3
  $region8: #{soft_dice_loss.1} parent=0 // loop_exit
    _

</llo_original>
